<compile_context>
chip_gen: v5e
topology: v5e:2x2
jax: 0.10.0
libtpu: 0.0.40
codegen_flags: <defaults>
</compile_context>

<pallas_src>
import functools

import jax
import jax.numpy as jnp
from jax.experimental import pallas as pl
from jax.experimental.pallas import tpu as pltpu

_LANE = 128
_SUBLANE = 8


def _round_up(x, m):
    return ((x + m - 1) // m) * m


def mlp_kernel(*refs, n_layers, compute_dtype):
    """One batch tile through the whole MLP; all weights resident in VMEM."""
    if n_layers > 0:
        (x_ref, w_in_ref, b_in_ref, w_h_ref, b_h_ref,
         w_out_ref, b_out_ref, o_ref) = refs
    else:
        x_ref, w_in_ref, b_in_ref, w_out_ref, b_out_ref, o_ref = refs
        w_h_ref = b_h_ref = None

    # Input layer: (tm, D_in) @ (D_in, W); f32 accumulation on the MXU.
    h = jnp.dot(x_ref[...], w_in_ref[...], preferred_element_type=jnp.float32)
    h = jnp.maximum(h + b_in_ref[...], 0.0)

    # Hidden layers (n_layers is static -> unrolled).
    for i in range(n_layers):
        h = jnp.dot(h.astype(compute_dtype), w_h_ref[i],
                    preferred_element_type=jnp.float32)
        h = jnp.maximum(h + b_h_ref[i], 0.0)

    # Output layer; single lane-dense store per tile.
    out = jnp.dot(h.astype(compute_dtype), w_out_ref[...],
                  preferred_element_type=jnp.float32) + b_out_ref[...]
    o_ref[...] = out.astype(o_ref.dtype)


def _pad2(a, rows, cols):
    return jnp.pad(a, ((0, rows - a.shape[0]), (0, cols - a.shape[1])))


def mlp_forward(x, params, *, n_layers, tm=None, compute_dtype=jnp.float32):
    """Fused MLP forward. x: [batch, input_dim] f32. Returns f32 [batch, output_dim]."""
    w_in, b_in, w_h, b_h, w_out, b_out = params
    B, input_dim = x.shape
    n_width = w_in.shape[1]
    output_dim = w_out.shape[1]

    cdt = jnp.dtype(compute_dtype)
    sub = max(_SUBLANE, 32 // cdt.itemsize)      # 8 rows for f32, 16 for bf16

    # Lane-dense padded feature dims (multiples of 128).
    d_in = _round_up(input_dim, _LANE)
    wp = _round_up(n_width, _LANE)
    d_out = _round_up(output_dim, _LANE)

    # ---- choose the batch tile under a VMEM budget sized for v7x (64 MiB). ----
    weight_bytes = (d_in * wp + n_layers * wp * wp + wp * d_out) * cdt.itemsize
    bias_bytes = ((n_layers + 1) * wp + d_out) * 4
    budget = 40 * 1024 * 1024

    def vmem_usage(t):
        io = 2 * t * d_in * cdt.itemsize + 2 * t * d_out * 4  # dbl-buffered x / out
        act = 3 * t * wp * 4                                  # f32 activations
        return weight_bytes + bias_bytes + io + act

    tile = tm if tm is not None else 256
    tile = max(sub, min(_round_up(tile, sub), _round_up(B, sub)))
    while tile > sub and vmem_usage(tile) > budget:
        tile = max(sub, _round_up(tile // 2, sub))
    # TODO(synk): if the resident weight stack alone exceeds the VMEM budget
    # (very large n_width on v7x), tile the hidden matmuls over n_width instead
    # of keeping every layer fully resident.

    b_pad = _round_up(B, tile)

    # ---- pad operands to lane/sublane-dense shapes (zeros are exact). ----
    x_p = jnp.pad(x, ((0, b_pad - B), (0, d_in - input_dim))).astype(cdt)
    w_in_p = _pad2(w_in, d_in, wp).astype(cdt)
    b_in_p = _pad2(b_in, 1, wp).astype(jnp.float32)
    w_out_p = _pad2(w_out, wp, d_out).astype(cdt)
    b_out_p = _pad2(b_out, 1, d_out).astype(jnp.float32)

    inputs = [x_p, w_in_p, b_in_p]
    if n_layers > 0:
        w_h_p = jnp.pad(
            w_h, ((0, 0), (0, wp - n_width), (0, wp - n_width))).astype(cdt)
        b_h_p = jnp.pad(
            b_h, ((0, 0), (0, 0), (0, wp - n_width))).astype(jnp.float32)
        inputs += [w_h_p, b_h_p]
    inputs += [w_out_p, b_out_p]

    grid = (b_pad // tile,)
    flops = 2 * b_pad * (d_in * wp + n_layers * wp * wp + wp * d_out)
    bytes_accessed = (sum(int(a.size) * a.dtype.itemsize for a in inputs)
                      + b_pad * d_out * 4)

    kernel = functools.partial(mlp_kernel, n_layers=n_layers, compute_dtype=cdt)

    def build(weight_mode):
        def const_spec(shape):
            idx = lambda i: (0,) * len(shape)
            if weight_mode is None:
                return pl.BlockSpec(shape, idx)
            return pl.BlockSpec(shape, idx, pipeline_mode=weight_mode)

        in_specs = [pl.BlockSpec((tile, d_in), lambda i: (i, 0)),  # x tile
                    const_spec((d_in, wp)),                         # W_in
                    const_spec((1, wp))]                            # b_in
        if n_layers > 0:
            in_specs += [const_spec((n_layers, wp, wp)),            # stacked hidden W
                         const_spec((n_layers, 1, wp))]             # stacked hidden b
        in_specs += [const_spec((wp, d_out)),                       # W_out
                     const_spec((1, d_out))]                        # b_out

        return pl.pallas_call(
            kernel,
            out_shape=jax.ShapeDtypeStruct((b_pad, d_out), jnp.float32),
            grid_spec=pltpu.PrefetchScalarGridSpec(
                num_scalar_prefetch=0,
                grid=grid,
                in_specs=in_specs,
                out_specs=pl.BlockSpec((tile, d_out), lambda i: (i, 0)),
            ),
            compiler_params=pltpu.CompilerParams(
                dimension_semantics=("parallel",),
                vmem_limit_bytes=int(min(max(2 * vmem_usage(tile), 32 << 20),
                                         56 << 20))),
            cost_estimate=pl.CostEstimate(
                flops=flops, transcendentals=0, bytes_accessed=bytes_accessed),
        )

    try:
        # Grid-invariant weights/biases: single-buffered (halves their VMEM cost).
        out_p = build(pl.Buffered(1))(*inputs)
    except Exception:
        # Fallback for lowerings without pipeline_mode support (default 2x buffers).
        out_p = build(None)(*inputs)

    return out_p[:B, :output_dim]


def init_params(key, n_width, n_layers, input_dim, output_dim):
    """Kaiming-uniform(relu) weights, zero biases (as in MLP._init_weights)."""
    def kaiming_uniform(k, fan_in, shape):
        bound = jnp.sqrt(6.0 / fan_in)  # gain=sqrt(2) -> sqrt(3)*gain/sqrt(fan_in)
        return jax.random.uniform(k, shape, jnp.float32, -bound, bound)

    keys = jax.random.split(key, n_layers + 2)
    # Stored as [in, out] (transposed vs. torch's [out, in]) so kernel does x @ W.
    w_in = kaiming_uniform(keys[0], input_dim, (input_dim, n_width))
    b_in = jnp.zeros((1, n_width), jnp.float32)
    if n_layers > 0:
        w_h = jnp.stack([kaiming_uniform(keys[1 + i], n_width, (n_width, n_width))
                         for i in range(n_layers)])
    else:
        w_h = jnp.zeros((0, n_width, n_width), jnp.float32)
    b_h = jnp.zeros((n_layers, 1, n_width), jnp.float32)
    w_out = kaiming_uniform(keys[-1], n_width, (n_width, output_dim))
    b_out = jnp.zeros((1, output_dim), jnp.float32)
    return w_in, b_in, w_h, b_h, w_out, b_out


def mlp_reference(x, params, n_layers):
    """Pure-JAX reference for correctness checking."""
    w_in, b_in, w_h, b_h, w_out, b_out = params
    h = jnp.maximum(x @ w_in + b_in, 0.0)
    for i in range(n_layers):
        h = jnp.maximum(h @ w_h[i] + b_h[i], 0.0)
    return h @ w_out + b_out


if __name__ == "__main__":
    n_width, n_layers = 32, 2
    input_dim, output_dim = 4, 3
    batch = 16

    key = jax.random.PRNGKey(0)
    k_x, k_p = jax.random.split(key)
    x = jax.random.normal(k_x, (batch, input_dim), jnp.float32)
    params = init_params(k_p, n_width, n_layers, input_dim, output_dim)

    ref = mlp_reference(x, params, n_layers)

    # f32 path (tight tolerance vs. reference).
    out = jax.block_until_ready(mlp_forward(x, params, n_layers=n_layers))
    assert out.shape == (batch, output_dim)
    assert jnp.allclose(out, ref, atol=1e-5, rtol=1e-5)

    # bf16 weights/activations with f32 accumulation (v6e/v7x fast path).
    out_bf16 = jax.block_until_ready(
        mlp_forward(x, params, n_layers=n_layers, compute_dtype=jnp.bfloat16))
    assert jnp.allclose(out_bf16, ref, atol=2e-1, rtol=5e-2)

    # n_layers == 0 path (no dummy hidden-weight DMA).
    params0 = init_params(k_p, n_width, 0, input_dim, output_dim)
    out0 = jax.block_until_ready(mlp_forward(x, params0, n_layers=0))
    assert jnp.allclose(out0, mlp_reference(x, params0, 0), atol=1e-5, rtol=1e-5)

    print("KERNEL_OK")
</pallas_src>

<mosaic_0001>
module attributes {stable_mosaic.version = 11 : i64} {
  func.func @mlp_kernel(%arg0: i32, %arg1: memref<16x128xf32, #tpu.memory_space<vmem>>, %arg2: memref<128x128xf32, #tpu.memory_space<vmem>>, %arg3: memref<1x128xf32, #tpu.memory_space<vmem>>, %arg4: memref<2x128x128xf32, #tpu.memory_space<vmem>>, %arg5: memref<2x1x128xf32, #tpu.memory_space<vmem>>, %arg6: memref<128x128xf32, #tpu.memory_space<vmem>>, %arg7: memref<1x128xf32, #tpu.memory_space<vmem>>, %arg8: memref<16x128xf32, #tpu.memory_space<vmem>>) attributes {dimension_semantics = [#tpu.dimension_semantics<parallel>], iteration_bounds = array<i64: 1>, scalar_prefetch = 0 : i64, scratch_operands = 0 : i64, tpu.core_type = #tpu.core_type<tc>, window_params = [{transform_indices = @transform_0, window_bounds = array<i64: 16, 128>}, {pipeline_mode = #tpu.pipeline_mode<synchronous>, transform_indices = @transform_1, window_bounds = array<i64: 128, 128>}, {pipeline_mode = #tpu.pipeline_mode<synchronous>, transform_indices = @transform_2, window_bounds = array<i64: 1, 128>}, {pipeline_mode = #tpu.pipeline_mode<synchronous>, transform_indices = @transform_3, window_bounds = array<i64: 2, 128, 128>}, {pipeline_mode = #tpu.pipeline_mode<synchronous>, transform_indices = @transform_4, window_bounds = array<i64: 2, 1, 128>}, {pipeline_mode = #tpu.pipeline_mode<synchronous>, transform_indices = @transform_5, window_bounds = array<i64: 128, 128>}, {pipeline_mode = #tpu.pipeline_mode<synchronous>, transform_indices = @transform_6, window_bounds = array<i64: 1, 128>}, {transform_indices = @transform_7, window_bounds = array<i64: 16, 128>}]} {
    %c0 = arith.constant 0 : index
    %c0_0 = arith.constant 0 : index
    %0 = vector.load %arg1[%c0, %c0_0] : memref<16x128xf32, #tpu.memory_space<vmem>>, vector<16x128xf32>
    %c0_1 = arith.constant 0 : index
    %c0_2 = arith.constant 0 : index
    %1 = vector.load %arg2[%c0_1, %c0_2] : memref<128x128xf32, #tpu.memory_space<vmem>>, vector<128x128xf32>
    %cst = arith.constant dense<0.000000e+00> : vector<16x128xf32>
    %2 = tpu.matmul %0, %1, %cst {dimension_numbers = #tpu.dot_dimension_numbers<[1], [0], [0], [1], [0, 0, 1, 1], [], []>} : vector<16x128xf32>, vector<128x128xf32>, vector<16x128xf32> -> vector<16x128xf32>
    %c0_3 = arith.constant 0 : index
    %c0_4 = arith.constant 0 : index
    %3 = vector.load %arg3[%c0_3, %c0_4] : memref<1x128xf32, #tpu.memory_space<vmem>>, vector<1x128xf32>
    %4 = vector.broadcast %3 : vector<1x128xf32> to vector<16x128xf32>
    %5 = arith.addf %2, %4 : vector<16x128xf32>
    %cst_5 = arith.constant 0.000000e+00 : f32
    %6 = vector.broadcast %cst_5 : f32 to vector<16x128xf32>
    %7 = arith.maximumf %5, %6 : vector<16x128xf32>
    %c0_6 = arith.constant 0 : index
    %c0_7 = arith.constant 0 : index
    %c0_8 = arith.constant 0 : index
    %8 = vector.load %arg4[%c0_6, %c0_7, %c0_8] : memref<2x128x128xf32, #tpu.memory_space<vmem>>, vector<1x128x128xf32>
    %9 = vector.shape_cast %8 : vector<1x128x128xf32> to vector<128x128xf32>
    %cst_9 = arith.constant dense<0.000000e+00> : vector<16x128xf32>
    %10 = tpu.matmul %7, %9, %cst_9 {dimension_numbers = #tpu.dot_dimension_numbers<[1], [0], [0], [1], [0, 0, 1, 1], [], []>} : vector<16x128xf32>, vector<128x128xf32>, vector<16x128xf32> -> vector<16x128xf32>
    %c0_10 = arith.constant 0 : index
    %c0_11 = arith.constant 0 : index
    %c0_12 = arith.constant 0 : index
    %11 = vector.load %arg5[%c0_10, %c0_11, %c0_12] : memref<2x1x128xf32, #tpu.memory_space<vmem>>, vector<1x1x128xf32>
    %12 = vector.shape_cast %11 : vector<1x1x128xf32> to vector<1x128xf32>
    %13 = vector.broadcast %12 : vector<1x128xf32> to vector<16x128xf32>
    %14 = arith.addf %10, %13 : vector<16x128xf32>
    %cst_13 = arith.constant 0.000000e+00 : f32
    %15 = vector.broadcast %cst_13 : f32 to vector<16x128xf32>
    %16 = arith.maximumf %14, %15 : vector<16x128xf32>
    %c1 = arith.constant 1 : index
    %c0_14 = arith.constant 0 : index
    %c0_15 = arith.constant 0 : index
    %17 = vector.load %arg4[%c1, %c0_14, %c0_15] : memref<2x128x128xf32, #tpu.memory_space<vmem>>, vector<1x128x128xf32>
    %18 = vector.shape_cast %17 : vector<1x128x128xf32> to vector<128x128xf32>
    %cst_16 = arith.constant dense<0.000000e+00> : vector<16x128xf32>
    %19 = tpu.matmul %16, %18, %cst_16 {dimension_numbers = #tpu.dot_dimension_numbers<[1], [0], [0], [1], [0, 0, 1, 1], [], []>} : vector<16x128xf32>, vector<128x128xf32>, vector<16x128xf32> -> vector<16x128xf32>
    %c1_17 = arith.constant 1 : index
    %c0_18 = arith.constant 0 : index
    %c0_19 = arith.constant 0 : index
    %20 = vector.load %arg5[%c1_17, %c0_18, %c0_19] : memref<2x1x128xf32, #tpu.memory_space<vmem>>, vector<1x1x128xf32>
    %21 = vector.shape_cast %20 : vector<1x1x128xf32> to vector<1x128xf32>
    %22 = vector.broadcast %21 : vector<1x128xf32> to vector<16x128xf32>
    %23 = arith.addf %19, %22 : vector<16x128xf32>
    %cst_20 = arith.constant 0.000000e+00 : f32
    %24 = vector.broadcast %cst_20 : f32 to vector<16x128xf32>
    %25 = arith.maximumf %23, %24 : vector<16x128xf32>
    %c0_21 = arith.constant 0 : index
    %c0_22 = arith.constant 0 : index
    %26 = vector.load %arg6[%c0_21, %c0_22] : memref<128x128xf32, #tpu.memory_space<vmem>>, vector<128x128xf32>
    %cst_23 = arith.constant dense<0.000000e+00> : vector<16x128xf32>
    %27 = tpu.matmul %25, %26, %cst_23 {dimension_numbers = #tpu.dot_dimension_numbers<[1], [0], [0], [1], [0, 0, 1, 1], [], []>} : vector<16x128xf32>, vector<128x128xf32>, vector<16x128xf32> -> vector<16x128xf32>
    %c0_24 = arith.constant 0 : index
    %c0_25 = arith.constant 0 : index
    %28 = vector.load %arg7[%c0_24, %c0_25] : memref<1x128xf32, #tpu.memory_space<vmem>>, vector<1x128xf32>
    %29 = vector.broadcast %28 : vector<1x128xf32> to vector<16x128xf32>
    %30 = arith.addf %27, %29 : vector<16x128xf32>
    %c0_26 = arith.constant 0 : index
    %c0_27 = arith.constant 0 : index
    %31 = vector.load %arg8[%c0_26, %c0_27] : memref<16x128xf32, #tpu.memory_space<vmem>>, vector<16x128xf32>
    tpu.vector_store %arg8[%c0_26, %c0_27], %30 {strides = array<i32>} : memref<16x128xf32, #tpu.memory_space<vmem>>, vector<16x128xf32>,
    return
  }
  func.func @transform_0(%arg0: i32) -> (i32, i32) {
    %c0_i32 = arith.constant 0 : i32
    %c0_i32_0 = arith.constant 0 : i32
    return %arg0, %c0_i32 : i32, i32
  }
  func.func @transform_1(%arg0: i32) -> (i32, i32) {
    %c0_i32 = arith.constant 0 : i32
    %c0_i32_0 = arith.constant 0 : i32
    %c0_i32_1 = arith.constant 0 : i32
    return %c0_i32, %c0_i32_0 : i32, i32
  }
  func.func @transform_2(%arg0: i32) -> (i32, i32) {
    %c0_i32 = arith.constant 0 : i32
    %c0_i32_0 = arith.constant 0 : i32
    %c0_i32_1 = arith.constant 0 : i32
    return %c0_i32, %c0_i32_0 : i32, i32
  }
  func.func @transform_3(%arg0: i32) -> (i32, i32, i32) {
    %c0_i32 = arith.constant 0 : i32
    %c0_i32_0 = arith.constant 0 : i32
    %c0_i32_1 = arith.constant 0 : i32
    %c0_i32_2 = arith.constant 0 : i32
    return %c0_i32, %c0_i32_0, %c0_i32_1 : i32, i32, i32
  }
  func.func @transform_4(%arg0: i32) -> (i32, i32, i32) {
    %c0_i32 = arith.constant 0 : i32
    %c0_i32_0 = arith.constant 0 : i32
    %c0_i32_1 = arith.constant 0 : i32
    %c0_i32_2 = arith.constant 0 : i32
    return %c0_i32, %c0_i32_0, %c0_i32_1 : i32, i32, i32
  }
  func.func @transform_5(%arg0: i32) -> (i32, i32) {
    %c0_i32 = arith.constant 0 : i32
    %c0_i32_0 = arith.constant 0 : i32
    %c0_i32_1 = arith.constant 0 : i32
    return %c0_i32, %c0_i32_0 : i32, i32
  }
  func.func @transform_6(%arg0: i32) -> (i32, i32) {
    %c0_i32 = arith.constant 0 : i32
    %c0_i32_0 = arith.constant 0 : i32
    %c0_i32_1 = arith.constant 0 : i32
    return %c0_i32, %c0_i32_0 : i32, i32
  }
  func.func @transform_7(%arg0: i32) -> (i32, i32) {
    %c0_i32 = arith.constant 0 : i32
    %c0_i32_0 = arith.constant 0 : i32
    return %arg0, %c0_i32 : i32, i32
  }
}

module attributes {stable_mosaic.version = 11 : i64} {
  func.func @mlp_kernel(%arg0: i32, %arg1: memref<16x128xf32, #tpu.memory_space<vmem>>, %arg2: memref<128x128xf32, #tpu.memory_space<vmem>>, %arg3: memref<1x128xf32, #tpu.memory_space<vmem>>, %arg4: memref<2x128x128xf32, #tpu.memory_space<vmem>>, %arg5: memref<2x1x128xf32, #tpu.memory_space<vmem>>, %arg6: memref<128x128xf32, #tpu.memory_space<vmem>>, %arg7: memref<1x128xf32, #tpu.memory_space<vmem>>, %arg8: memref<16x128xf32, #tpu.memory_space<vmem>>) attributes {dimension_semantics = [#tpu.dimension_semantics<parallel>], iteration_bounds = array<i64: 1>, scalar_prefetch = 0 : i64, scratch_operands = 0 : i64, tpu.core_type = #tpu.core_type<tc>, window_params = [{transform_indices = @transform_0, window_bounds = array<i64: 16, 128>}, {pipeline_mode = #tpu.pipeline_mode<synchronous>, transform_indices = @transform_1, window_bounds = array<i64: 128, 128>}, {pipeline_mode = #tpu.pipeline_mode<synchronous>, transform_indices = @transform_2, window_bounds = array<i64: 1, 128>}, {pipeline_mode = #tpu.pipeline_mode<synchronous>, transform_indices = @transform_3, window_bounds = array<i64: 2, 128, 128>}, {pipeline_mode = #tpu.pipeline_mode<synchronous>, transform_indices = @transform_4, window_bounds = array<i64: 2, 1, 128>}, {pipeline_mode = #tpu.pipeline_mode<synchronous>, transform_indices = @transform_5, window_bounds = array<i64: 128, 128>}, {pipeline_mode = #tpu.pipeline_mode<synchronous>, transform_indices = @transform_6, window_bounds = array<i64: 1, 128>}, {transform_indices = @transform_7, window_bounds = array<i64: 16, 128>}]} {
    %c0 = arith.constant 0 : index
    %c0_0 = arith.constant 0 : index
    %0 = vector.load %arg1[%c0, %c0_0] : memref<16x128xf32, #tpu.memory_space<vmem>>, vector<16x128xf32>
    %c0_1 = arith.constant 0 : index
    %c0_2 = arith.constant 0 : index
    %1 = vector.load %arg2[%c0_1, %c0_2] : memref<128x128xf32, #tpu.memory_space<vmem>>, vector<128x128xf32>
    %cst = arith.constant dense<0.000000e+00> : vector<16x128xf32>
    %2 = tpu.matmul %0, %1, %cst {dimension_numbers = #tpu.dot_dimension_numbers<[1], [0], [0], [1], [0, 0, 1, 1], [], []>} : vector<16x128xf32>, vector<128x128xf32>, vector<16x128xf32> -> vector<16x128xf32>
    %c0_3 = arith.constant 0 : index
    %c0_4 = arith.constant 0 : index
    %3 = vector.load %arg3[%c0_3, %c0_4] : memref<1x128xf32, #tpu.memory_space<vmem>>, vector<1x128xf32>
    %4 = vector.broadcast %3 : vector<1x128xf32> to vector<16x128xf32>
    %5 = arith.addf %2, %4 : vector<16x128xf32>
    %cst_5 = arith.constant 0.000000e+00 : f32
    %6 = vector.broadcast %cst_5 : f32 to vector<16x128xf32>
    %7 = arith.maximumf %5, %6 : vector<16x128xf32>
    %c0_6 = arith.constant 0 : index
    %c0_7 = arith.constant 0 : index
    %c0_8 = arith.constant 0 : index
    %8 = vector.load %arg4[%c0_6, %c0_7, %c0_8] : memref<2x128x128xf32, #tpu.memory_space<vmem>>, vector<1x128x128xf32>
    %9 = vector.shape_cast %8 : vector<1x128x128xf32> to vector<128x128xf32>
    %cst_9 = arith.constant dense<0.000000e+00> : vector<16x128xf32>
    %10 = tpu.matmul %7, %9, %cst_9 {dimension_numbers = #tpu.dot_dimension_numbers<[1], [0], [0], [1], [0, 0, 1, 1], [], []>} : vector<16x128xf32>, vector<128x128xf32>, vector<16x128xf32> -> vector<16x128xf32>
    %c0_10 = arith.constant 0 : index
    %c0_11 = arith.constant 0 : index
    %c0_12 = arith.constant 0 : index
    %11 = vector.load %arg5[%c0_10, %c0_11, %c0_12] : memref<2x1x128xf32, #tpu.memory_space<vmem>>, vector<1x1x128xf32>
    %12 = vector.shape_cast %11 : vector<1x1x128xf32> to vector<1x128xf32>
    %13 = vector.broadcast %12 : vector<1x128xf32> to vector<16x128xf32>
    %14 = arith.addf %10, %13 : vector<16x128xf32>
    %cst_13 = arith.constant 0.000000e+00 : f32
    %15 = vector.broadcast %cst_13 : f32 to vector<16x128xf32>
    %16 = arith.maximumf %14, %15 : vector<16x128xf32>
    %c1 = arith.constant 1 : index
    %c0_14 = arith.constant 0 : index
    %c0_15 = arith.constant 0 : index
    %17 = vector.load %arg4[%c1, %c0_14, %c0_15] : memref<2x128x128xf32, #tpu.memory_space<vmem>>, vector<1x128x128xf32>
    %18 = vector.shape_cast %17 : vector<1x128x128xf32> to vector<128x128xf32>
    %cst_16 = arith.constant dense<0.000000e+00> : vector<16x128xf32>
    %19 = tpu.matmul %16, %18, %cst_16 {dimension_numbers = #tpu.dot_dimension_numbers<[1], [0], [0], [1], [0, 0, 1, 1], [], []>} : vector<16x128xf32>, vector<128x128xf32>, vector<16x128xf32> -> vector<16x128xf32>
    %c1_17 = arith.constant 1 : index
    %c0_18 = arith.constant 0 : index
    %c0_19 = arith.constant 0 : index
    %20 = vector.load %arg5[%c1_17, %c0_18, %c0_19] : memref<2x1x128xf32, #tpu.memory_space<vmem>>, vector<1x1x128xf32>
    %21 = vector.shape_cast %20 : vector<1x1x128xf32> to vector<1x128xf32>
    %22 = vector.broadcast %21 : vector<1x128xf32> to vector<16x128xf32>
    %23 = arith.addf %19, %22 : vector<16x128xf32>
    %cst_20 = arith.constant 0.000000e+00 : f32
    %24 = vector.broadcast %cst_20 : f32 to vector<16x128xf32>
    %25 = arith.maximumf %23, %24 : vector<16x128xf32>
    %c0_21 = arith.constant 0 : index
    %c0_22 = arith.constant 0 : index
    %26 = vector.load %arg6[%c0_21, %c0_22] : memref<128x128xf32, #tpu.memory_space<vmem>>, vector<128x128xf32>
    %cst_23 = arith.constant dense<0.000000e+00> : vector<16x128xf32>
    %27 = tpu.matmul %25, %26, %cst_23 {dimension_numbers = #tpu.dot_dimension_numbers<[1], [0], [0], [1], [0, 0, 1, 1], [], []>} : vector<16x128xf32>, vector<128x128xf32>, vector<16x128xf32> -> vector<16x128xf32>
    %c0_24 = arith.constant 0 : index
    %c0_25 = arith.constant 0 : index
    %28 = vector.load %arg7[%c0_24, %c0_25] : memref<1x128xf32, #tpu.memory_space<vmem>>, vector<1x128xf32>
    %29 = vector.broadcast %28 : vector<1x128xf32> to vector<16x128xf32>
    %30 = arith.addf %27, %29 : vector<16x128xf32>
    %c0_26 = arith.constant 0 : index
    %c0_27 = arith.constant 0 : index
    %31 = vector.load %arg8[%c0_26, %c0_27] : memref<16x128xf32, #tpu.memory_space<vmem>>, vector<16x128xf32>
    tpu.vector_store %arg8[%c0_26, %c0_27], %30 {strides = array<i32>} : memref<16x128xf32, #tpu.memory_space<vmem>>, vector<16x128xf32>,
    return
  }
  func.func @transform_0(%arg0: i32) -> (i32, i32) {
    %c0_i32 = arith.constant 0 : i32
    %c0_i32_0 = arith.constant 0 : i32
    return %arg0, %c0_i32 : i32, i32
  }
  func.func @transform_1(%arg0: i32) -> (i32, i32) {
    %c0_i32 = arith.constant 0 : i32
    %c0_i32_0 = arith.constant 0 : i32
    %c0_i32_1 = arith.constant 0 : i32
    return %c0_i32, %c0_i32_0 : i32, i32
  }
  func.func @transform_2(%arg0: i32) -> (i32, i32) {
    %c0_i32 = arith.constant 0 : i32
    %c0_i32_0 = arith.constant 0 : i32
    %c0_i32_1 = arith.constant 0 : i32
    return %c0_i32, %c0_i32_0 : i32, i32
  }
  func.func @transform_3(%arg0: i32) -> (i32, i32, i32) {
    %c0_i32 = arith.constant 0 : i32
    %c0_i32_0 = arith.constant 0 : i32
    %c0_i32_1 = arith.constant 0 : i32
    %c0_i32_2 = arith.constant 0 : i32
    return %c0_i32, %c0_i32_0, %c0_i32_1 : i32, i32, i32
  }
  func.func @transform_4(%arg0: i32) -> (i32, i32, i32) {
    %c0_i32 = arith.constant 0 : i32
    %c0_i32_0 = arith.constant 0 : i32
    %c0_i32_1 = arith.constant 0 : i32
    %c0_i32_2 = arith.constant 0 : i32
    return %c0_i32, %c0_i32_0, %c0_i32_1 : i32, i32, i32
  }
  func.func @transform_5(%arg0: i32) -> (i32, i32) {
    %c0_i32 = arith.constant 0 : i32
    %c0_i32_0 = arith.constant 0 : i32
    %c0_i32_1 = arith.constant 0 : i32
    return %c0_i32, %c0_i32_0 : i32, i32
  }
  func.func @transform_6(%arg0: i32) -> (i32, i32) {
    %c0_i32 = arith.constant 0 : i32
    %c0_i32_0 = arith.constant 0 : i32
    %c0_i32_1 = arith.constant 0 : i32
    return %c0_i32, %c0_i32_0 : i32, i32
  }
  func.func @transform_7(%arg0: i32) -> (i32, i32) {
    %c0_i32 = arith.constant 0 : i32
    %c0_i32_0 = arith.constant 0 : i32
    return %arg0, %c0_i32 : i32, i32
  }
}

</mosaic_0001>

<llo_original>
// kernel: tpu_custom_call.1
$region0: #{tpu_custom_call.1}
  #allocation0 [shape = 'u32[]', space=smem, size = 0x4, offset = 0x4, fixed_abs, tag = 'smem constant byte address 0x4 - core index']
  #allocation1 [shape = 'u32[72,128]{1,0:T(1,128)}', space=vmem, size = 0x9000, scoped, tag = 'internal scratch']
  %s0 = inlined_call_operand.hbm [shape: f32[16,128], index: 0, kind: input, shape index: {}]
  %s1 = inlined_call_operand.hbm [shape: f32[128,128], index: 1, kind: input, shape index: {}]
  %s2 = inlined_call_operand.vmem [shape: f32[1,128], index: 2, kind: input, shape index: {}]
  %s3 = inlined_call_operand.hbm [shape: f32[2,128,128], index: 3, kind: input, shape index: {}]
  %s4 = inlined_call_operand.vmem [shape: f32[2,1,128], index: 4, kind: input, shape index: {}]
  %s5 = inlined_call_operand.hbm [shape: f32[128,128], index: 5, kind: input, shape index: {}]
  %s6 = inlined_call_operand.vmem [shape: f32[1,128], index: 6, kind: input, shape index: {}]
  %s7 = inlined_call_operand.hbm [shape: f32[16,128], index: 7, kind: output, shape index: {}]
  %s8 = sld [smem:[#allocation0]]
  $region54: #{tpu_custom_call.1} parent=0
    _
  %s10 = ssub.s32 1, %s8
  %s11 = scalar_select 0, %s10, %s8
  $region1: #{tpu_custom_call.1} parent=0
    #allocation2 [shape = 'u8[8192]{0}', space=vmem, size = 0x2000, scoped, tag = 'input window, operand 0, single buffered']
    #allocation3 [shape = 's32[1]{0}', space=sflag, size = 0x4, scoped, tag = 'scoped memory for tpu_custom_call.1']
    #allocation4 [shape = 's32[1]{0}', space=sflag, size = 0x4, scoped, tag = 'scoped memory for tpu_custom_call.1']
    #allocation5 [shape = 'u8[65536]{0}', space=vmem, size = 0x10000, scoped, tag = 'input window, operand 1, single buffered']
    #allocation6 [shape = 's32[1]{0}', space=sflag, size = 0x4, scoped, tag = 'scoped memory for tpu_custom_call.1']
    #allocation7 [shape = 'u8[131072]{0}', space=vmem, size = 0x20000, scoped, tag = 'input window, operand 3, single buffered']
    #allocation8 [shape = 'u8[65536]{0}', space=vmem, size = 0x10000, scoped, tag = 'input window, operand 5, single buffered']
    #allocation9 [shape = 's32[1]{0}', space=sflag, size = 0x4, scoped, tag = 'scoped memory for tpu_custom_call.1']
    #allocation10 [shape = 'u8[8192]{0}', space=vmem, size = 0x2000, scoped, tag = 'output window, operand 0, single buffered']
    %12 = vsyncpa [#allocation3], 0
    %13 = vsyncpa [#allocation6], 0
    %14 = vsyncpa [#allocation9], 0
    %15 = vsyncpa [#allocation4], 0
    // Predicated region
    $region2: #{tpu_custom_call.1} parent=1 // pred_check
      _
    $region3: #{tpu_custom_call.1} parent=1 // pred_check_branch
      %17 = sbr.rel (0) target = $region5
    $region4: #{tpu_custom_call.1} parent=1 // pred_region
      %19 = vsyncadd [#allocation3], 0
      %s20 = sshll.u32 %s0, 4
      %s21 = int_to_ptr.hbm [resolvable:$true] %s20
      %s22 = sshll.u32 [#allocation2], 4
      %s23 = int_to_ptr.vmem [resolvable:$true] %s22
      %28 = dma.hbm_to_vmem [thread:$0]  %s21, 256, %s23, [#allocation3], 128, 128, 8
    $region5: #{tpu_custom_call.1} parent=1 // pred_fallthru
      _
    // Predicated region
    $region6: #{tpu_custom_call.1} parent=1 // pred_check
      _
    $region7: #{tpu_custom_call.1} parent=1 // pred_check_branch
      %30 = sbr.rel (0) target = $region9
    $region8: #{tpu_custom_call.1} parent=1 // pred_region
      %32 = vsyncadd [#allocation6], 0
      %s33 = sshll.u32 %s1, 4
      %s34 = int_to_ptr.hbm [resolvable:$true] %s33
      %s35 = sshll.u32 [#allocation5], 4
      %s36 = int_to_ptr.vmem [resolvable:$true] %s35
      %41 = dma.hbm_to_vmem [thread:$0]  %s34, 2048, %s36, [#allocation6], 128, 128, 8
    $region9: #{tpu_custom_call.1} parent=1 // pred_fallthru
      _
    // Predicated region
    $region10: #{tpu_custom_call.1} parent=1 // pred_check
      _
    $region11: #{tpu_custom_call.1} parent=1 // pred_check_branch
      %43 = sbr.rel (0) target = $region13
    $region12: #{tpu_custom_call.1} parent=1 // pred_region
      _
    $region13: #{tpu_custom_call.1} parent=1 // pred_fallthru
      _
    // Predicated region
    $region14: #{tpu_custom_call.1} parent=1 // pred_check
      _
    $region15: #{tpu_custom_call.1} parent=1 // pred_check_branch
      %45 = sbr.rel (0) target = $region17
    $region16: #{tpu_custom_call.1} parent=1 // pred_region
      %47 = vsyncadd [#allocation6], 0
      %s48 = sshll.u32 %s3, 4
      %s49 = int_to_ptr.hbm [resolvable:$true] %s48
      %s50 = sshll.u32 [#allocation7], 4
      %s51 = int_to_ptr.vmem [resolvable:$true] %s50
      %56 = dma.hbm_to_vmem [thread:$0]  %s49, 4096, %s51, [#allocation6], 128, 128, 8
    $region17: #{tpu_custom_call.1} parent=1 // pred_fallthru
      _
    // Predicated region
    $region18: #{tpu_custom_call.1} parent=1 // pred_check
      _
    $region19: #{tpu_custom_call.1} parent=1 // pred_check_branch
      %58 = sbr.rel (0) target = $region21
    $region20: #{tpu_custom_call.1} parent=1 // pred_region
      _
    $region21: #{tpu_custom_call.1} parent=1 // pred_fallthru
      _
    // Predicated region
    $region22: #{tpu_custom_call.1} parent=1 // pred_check
      _
    $region23: #{tpu_custom_call.1} parent=1 // pred_check_branch
      %60 = sbr.rel (0) target = $region25
    $region24: #{tpu_custom_call.1} parent=1 // pred_region
      %62 = vsyncadd [#allocation9], 0
      %s63 = sshll.u32 %s5, 4
      %s64 = int_to_ptr.hbm [resolvable:$true] %s63
      %s65 = sshll.u32 [#allocation8], 4
      %s66 = int_to_ptr.vmem [resolvable:$true] %s65
      %71 = dma.hbm_to_vmem [thread:$0]  %s64, 2048, %s66, [#allocation9], 128, 128, 8
    $region25: #{tpu_custom_call.1} parent=1 // pred_fallthru
      _
    // Predicated region
    $region26: #{tpu_custom_call.1} parent=1 // pred_check
      _
    $region27: #{tpu_custom_call.1} parent=1 // pred_check_branch
      %73 = sbr.rel (0) target = $region29
    $region28: #{tpu_custom_call.1} parent=1 // pred_region
      _
    $region29: #{tpu_custom_call.1} parent=1 // pred_fallthru
      _
    // Predicated region
    $region30: #{tpu_custom_call.1} parent=1 // pred_check
      _
    $region31: #{tpu_custom_call.1} parent=1 // pred_check_branch
      %75 = sbr.rel (0) target = $region33
    $region32: #{tpu_custom_call.1} parent=1 // pred_region
      %77 = dma.done [#allocation3], 256
    $region33: #{tpu_custom_call.1} parent=1 // pred_fallthru
      _
    // Predicated region
    $region34: #{tpu_custom_call.1} parent=1 // pred_check
      _
    $region35: #{tpu_custom_call.1} parent=1 // pred_check_branch
      %79 = sbr.rel (0) target = $region37
    $region36: #{tpu_custom_call.1} parent=1 // pred_region
      %81 = dma.done [#allocation6], 2048
    $region37: #{tpu_custom_call.1} parent=1 // pred_fallthru
      _
    // Predicated region
    $region38: #{tpu_custom_call.1} parent=1 // pred_check
      _
    $region39: #{tpu_custom_call.1} parent=1 // pred_check_branch
      %83 = sbr.rel (0) target = $region41
    $region40: #{tpu_custom_call.1} parent=1 // pred_region
      %85 = dma.done [#allocation6], 4096
    $region41: #{tpu_custom_call.1} parent=1 // pred_fallthru
      _
    // Predicated region
    $region42: #{tpu_custom_call.1} parent=1 // pred_check
      _
    $region43: #{tpu_custom_call.1} parent=1 // pred_check_branch
      %87 = sbr.rel (0) target = $region45
    $region44: #{tpu_custom_call.1} parent=1 // pred_region
      %89 = dma.done [#allocation9], 2048
    $region45: #{tpu_custom_call.1} parent=1 // pred_fallthru
      _
    %v90 = vld [vmem:[#allocation2] sm:$0xff]
    %v91 = vld [vmem:[#allocation2 + $0x8] sm:$0xff]
    %v92 = vld [vmem:[#allocation5] sm:$0xff]
    %v93 = vld [vmem:[#allocation5 + $0x8] sm:$0xff]
    %v94 = vld [vmem:[#allocation5 + $0x10] sm:$0xff]
    %v95 = vld [vmem:[#allocation5 + $0x18] sm:$0xff]
    %v96 = vld [vmem:[#allocation5 + $0x20] sm:$0xff]
    %v97 = vld [vmem:[#allocation5 + $0x28] sm:$0xff]
    %v98 = vld [vmem:[#allocation5 + $0x30] sm:$0xff]
    %v99 = vld [vmem:[#allocation5 + $0x38] sm:$0xff]
    %v100 = vld [vmem:[#allocation5 + $0x40] sm:$0xff]
    %v101 = vld [vmem:[#allocation5 + $0x48] sm:$0xff]
    %v102 = vld [vmem:[#allocation5 + $0x50] sm:$0xff]
    %v103 = vld [vmem:[#allocation5 + $0x58] sm:$0xff]
    %v104 = vld [vmem:[#allocation5 + $0x60] sm:$0xff]
    %v105 = vld [vmem:[#allocation5 + $0x68] sm:$0xff]
    %v106 = vld [vmem:[#allocation5 + $0x70] sm:$0xff]
    %v107 = vld [vmem:[#allocation5 + $0x78] sm:$0xff]
    %v108 = vld [vmem:[%s2] sm:$0x1]
    %v110 = vperm.slane %v108, 0
    %112 = vmatpush.msra.mxu0 %v107
    %113 = vmatpush.msra.mxu0 %v106
    %114 = vmatpush.msra.mxu0 %v105
    %115 = vmatpush.msra.mxu0 %v104
    %116 = vmatpush.msra.mxu0 %v103
    %117 = vmatpush.msra.mxu0 %v102
    %118 = vmatpush.msra.mxu0 %v101
    %119 = vmatpush.msra.mxu0 %v100
    %120 = vmatpush.msra.mxu0 %v99
    %121 = vmatpush.msra.mxu0 %v98
    %122 = vmatpush.msra.mxu0 %v97
    %123 = vmatpush.msra.mxu0 %v96
    %124 = vmatpush.msra.mxu0 %v95
    %125 = vmatpush.msra.mxu0 %v94
    %126 = vmatpush.msra.mxu0 %v93
    %127 = vmatpush.msra.mxu0 %v92
    %128 = vmatmul.f32.gmra.mxu0 %v90
    %v129 = vpop.f32.mrf.mxu0
    %v130 = vadd.f32 %v110, %v129
    %131 = vmatmul.f32.gmra.mxu0 %v91
    %v132 = vpop.f32.mrf.mxu0
    %v133 = vadd.f32 %v110, %v132
    %134 = vdwg.mxu0
    %v135 = vmax.f32 %v130, 0.0
    %v136 = vmax.f32 %v133, 0.0
    %v137 = vld [vmem:[#allocation7] sm:$0xff]
    %v138 = vld [vmem:[#allocation7 + $0x8] sm:$0xff]
    %v139 = vld [vmem:[#allocation7 + $0x10] sm:$0xff]
    %v140 = vld [vmem:[#allocation7 + $0x18] sm:$0xff]
    %v141 = vld [vmem:[#allocation7 + $0x20] sm:$0xff]
    %v142 = vld [vmem:[#allocation7 + $0x28] sm:$0xff]
    %v143 = vld [vmem:[#allocation7 + $0x30] sm:$0xff]
    %v144 = vld [vmem:[#allocation7 + $0x38] sm:$0xff]
    %v145 = vld [vmem:[#allocation7 + $0x40] sm:$0xff]
    %v146 = vld [vmem:[#allocation7 + $0x48] sm:$0xff]
    %v147 = vld [vmem:[#allocation7 + $0x50] sm:$0xff]
    %v148 = vld [vmem:[#allocation7 + $0x58] sm:$0xff]
    %v149 = vld [vmem:[#allocation7 + $0x60] sm:$0xff]
    %v150 = vld [vmem:[#allocation7 + $0x68] sm:$0xff]
    %v151 = vld [vmem:[#allocation7 + $0x70] sm:$0xff]
    %v152 = vld [vmem:[#allocation7 + $0x78] sm:$0xff]
    %v153 = vld [vmem:[%s4] sm:$0x1]
    %v155 = vperm.slane %v153, 0
    %157 = vmatpush.msra.mxu0 %v152
    %158 = vmatpush.msra.mxu0 %v151
    %159 = vmatpush.msra.mxu0 %v150
    %160 = vmatpush.msra.mxu0 %v149
    %161 = vmatpush.msra.mxu0 %v148
    %162 = vmatpush.msra.mxu0 %v147
    %163 = vmatpush.msra.mxu0 %v146
    %164 = vmatpush.msra.mxu0 %v145
    %165 = vmatpush.msra.mxu0 %v144
    %166 = vmatpush.msra.mxu0 %v143
    %167 = vmatpush.msra.mxu0 %v142
    %168 = vmatpush.msra.mxu0 %v141
    %169 = vmatpush.msra.mxu0 %v140
    %170 = vmatpush.msra.mxu0 %v139
    %171 = vmatpush.msra.mxu0 %v138
    %172 = vmatpush.msra.mxu0 %v137
    %173 = vmatmul.f32.gmra.mxu0 %v135
    %v174 = vpop.f32.mrf.mxu0
    %v175 = vadd.f32 %v155, %v174
    %176 = vmatmul.f32.gmra.mxu0 %v136
    %v177 = vpop.f32.mrf.mxu0
    %v178 = vadd.f32 %v155, %v177
    %179 = vdwg.mxu0
    %v180 = vmax.f32 %v175, 0.0
    %v181 = vmax.f32 %v178, 0.0
    %s182 = scalar_lea.vmem [#allocation7], 128
    %v183 = vld [vmem:[%s182] sm:$0xff]
    %v184 = vld [vmem:[%s182 + $0x8] sm:$0xff]
    %v185 = vld [vmem:[%s182 + $0x10] sm:$0xff]
    %v186 = vld [vmem:[%s182 + $0x18] sm:$0xff]
    %v187 = vld [vmem:[%s182 + $0x20] sm:$0xff]
    %v188 = vld [vmem:[%s182 + $0x28] sm:$0xff]
    %v189 = vld [vmem:[%s182 + $0x30] sm:$0xff]
    %v190 = vld [vmem:[%s182 + $0x38] sm:$0xff]
    %v191 = vld [vmem:[%s182 + $0x40] sm:$0xff]
    %v192 = vld [vmem:[%s182 + $0x48] sm:$0xff]
    %v193 = vld [vmem:[%s182 + $0x50] sm:$0xff]
    %v194 = vld [vmem:[%s182 + $0x58] sm:$0xff]
    %v195 = vld [vmem:[%s182 + $0x60] sm:$0xff]
    %v196 = vld [vmem:[%s182 + $0x68] sm:$0xff]
    %v197 = vld [vmem:[%s182 + $0x70] sm:$0xff]
    %v198 = vld [vmem:[%s182 + $0x78] sm:$0xff]
    %s199 = scalar_lea.vmem %s4, 1
    %v200 = vld [vmem:[%s199] sm:$0x1]
    %v202 = vperm.slane %v200, 0
    %204 = vmatpush.msra.mxu0 %v198
    %205 = vmatpush.msra.mxu0 %v197
    %206 = vmatpush.msra.mxu0 %v196
    %207 = vmatpush.msra.mxu0 %v195
    %208 = vmatpush.msra.mxu0 %v194
    %209 = vmatpush.msra.mxu0 %v193
    %210 = vmatpush.msra.mxu0 %v192
    %211 = vmatpush.msra.mxu0 %v191
    %212 = vmatpush.msra.mxu0 %v190
    %213 = vmatpush.msra.mxu0 %v189
    %214 = vmatpush.msra.mxu0 %v188
    %215 = vmatpush.msra.mxu0 %v187
    %216 = vmatpush.msra.mxu0 %v186
    %217 = vmatpush.msra.mxu0 %v185
    %218 = vmatpush.msra.mxu0 %v184
    %219 = vmatpush.msra.mxu0 %v183
    %220 = vmatmul.f32.gmra.mxu0 %v180
    %v221 = vpop.f32.mrf.mxu0
    %v222 = vadd.f32 %v202, %v221
    %223 = vmatmul.f32.gmra.mxu0 %v181
    %v224 = vpop.f32.mrf.mxu0
    %v225 = vadd.f32 %v202, %v224
    %226 = vdwg.mxu0
    %v227 = vmax.f32 %v222, 0.0
    %v228 = vmax.f32 %v225, 0.0
    %v229 = vld [vmem:[#allocation8] sm:$0xff]
    %v230 = vld [vmem:[#allocation8 + $0x8] sm:$0xff]
    %v231 = vld [vmem:[#allocation8 + $0x10] sm:$0xff]
    %v232 = vld [vmem:[#allocation8 + $0x18] sm:$0xff]
    %v233 = vld [vmem:[#allocation8 + $0x20] sm:$0xff]
    %v234 = vld [vmem:[#allocation8 + $0x28] sm:$0xff]
    %v235 = vld [vmem:[#allocation8 + $0x30] sm:$0xff]
    %v236 = vld [vmem:[#allocation8 + $0x38] sm:$0xff]
    %v237 = vld [vmem:[#allocation8 + $0x40] sm:$0xff]
    %v238 = vld [vmem:[#allocation8 + $0x48] sm:$0xff]
    %v239 = vld [vmem:[#allocation8 + $0x50] sm:$0xff]
    %v240 = vld [vmem:[#allocation8 + $0x58] sm:$0xff]
    %v241 = vld [vmem:[#allocation8 + $0x60] sm:$0xff]
    %v242 = vld [vmem:[#allocation8 + $0x68] sm:$0xff]
    %v243 = vld [vmem:[#allocation8 + $0x70] sm:$0xff]
    %v244 = vld [vmem:[#allocation8 + $0x78] sm:$0xff]
    %v245 = vld [vmem:[%s6] sm:$0x1]
    %v247 = vperm.slane %v245, 0
    %249 = vmatpush.msra.mxu0 %v244
    %250 = vmatpush.msra.mxu0 %v243
    %251 = vmatpush.msra.mxu0 %v242
    %252 = vmatpush.msra.mxu0 %v241
    %253 = vmatpush.msra.mxu0 %v240
    %254 = vmatpush.msra.mxu0 %v239
    %255 = vmatpush.msra.mxu0 %v238
    %256 = vmatpush.msra.mxu0 %v237
    %257 = vmatpush.msra.mxu0 %v236
    %258 = vmatpush.msra.mxu0 %v235
    %259 = vmatpush.msra.mxu0 %v234
    %260 = vmatpush.msra.mxu0 %v233
    %261 = vmatpush.msra.mxu0 %v232
    %262 = vmatpush.msra.mxu0 %v231
    %263 = vmatpush.msra.mxu0 %v230
    %264 = vmatpush.msra.mxu0 %v229
    %265 = vmatmul.f32.gmra.mxu0 %v227
    %v266 = vpop.f32.mrf.mxu0
    %v267 = vadd.f32 %v247, %v266
    %268 = vmatmul.f32.gmra.mxu0 %v228
    %v269 = vpop.f32.mrf.mxu0
    %v270 = vadd.f32 %v247, %v269
    %271 = vdwg.mxu0
    %272 = vst [vmem:[#allocation10] sm:$0xff] %v267
    %273 = vst [vmem:[#allocation10 + $0x8] sm:$0xff] %v270
    // Predicated region
    $region46: #{tpu_custom_call.1} parent=1 // pred_check
      _
    $region47: #{tpu_custom_call.1} parent=1 // pred_check_branch
      %275 = sbr.rel (0) target = $region49
    $region48: #{tpu_custom_call.1} parent=1 // pred_region
      %277 = vsyncadd [#allocation4], 0
      %s278 = sshll.u32 [#allocation10], 4
      %s279 = int_to_ptr.vmem [resolvable:$true] %s278
      %s280 = sshll.u32 %s7, 4
      %s281 = int_to_ptr.hbm [resolvable:$true] %s280
      %286 = dma.vmem_to_hbm [thread:$0]  %s279, 256, %s281, [#allocation4], 128, 128, 8
    $region49: #{tpu_custom_call.1} parent=1 // pred_fallthru
      _
    // Predicated region
    $region50: #{tpu_custom_call.1} parent=1 // pred_check
      _
    $region51: #{tpu_custom_call.1} parent=1 // pred_check_branch
      %288 = sbr.rel (0) target = $region53
    $region52: #{tpu_custom_call.1} parent=1 // pred_region
      %290 = dma.done [#allocation4], 256
    $region53: #{tpu_custom_call.1} parent=1 // pred_fallthru
      _
    %291 = vsyncpa [#allocation3], 1
    %292 = vsyncpa [#allocation6], 1
    %293 = vsyncpa [#allocation9], 1
    %294 = vsyncpa [#allocation4], 1

// kernel: tpu_custom_call.1
$region0: #{tpu_custom_call.1}
  #allocation0 [shape = 'u32[]', space=smem, size = 0x4, offset = 0x4, fixed_abs, tag = 'smem constant byte address 0x4 - core index']
  #allocation1 [shape = 'u32[72,128]{1,0:T(1,128)}', space=vmem, size = 0x9000, scoped, tag = 'internal scratch']
  %s0 = inlined_call_operand.hbm [shape: f32[16,128], index: 0, kind: input, shape index: {}]
  %s1 = inlined_call_operand.hbm [shape: f32[128,128], index: 1, kind: input, shape index: {}]
  %s2 = inlined_call_operand.vmem [shape: f32[1,128], index: 2, kind: input, shape index: {}]
  %s3 = inlined_call_operand.hbm [shape: f32[2,128,128], index: 3, kind: input, shape index: {}]
  %s4 = inlined_call_operand.vmem [shape: f32[2,1,128], index: 4, kind: input, shape index: {}]
  %s5 = inlined_call_operand.hbm [shape: f32[128,128], index: 5, kind: input, shape index: {}]
  %s6 = inlined_call_operand.vmem [shape: f32[1,128], index: 6, kind: input, shape index: {}]
  %s7 = inlined_call_operand.hbm [shape: f32[16,128], index: 7, kind: output, shape index: {}]
  %s8 = sld [smem:[#allocation0]]
  $region54: #{tpu_custom_call.1} parent=0
    _
  %s10 = ssub.s32 1, %s8
  %s11 = scalar_select 0, %s10, %s8
  $region1: #{tpu_custom_call.1} parent=0
    #allocation2 [shape = 'u8[8192]{0}', space=vmem, size = 0x2000, scoped, tag = 'input window, operand 0, single buffered']
    #allocation3 [shape = 's32[1]{0}', space=sflag, size = 0x4, scoped, tag = 'scoped memory for tpu_custom_call.1']
    #allocation4 [shape = 's32[1]{0}', space=sflag, size = 0x4, scoped, tag = 'scoped memory for tpu_custom_call.1']
    #allocation5 [shape = 'u8[65536]{0}', space=vmem, size = 0x10000, scoped, tag = 'input window, operand 1, single buffered']
    #allocation6 [shape = 's32[1]{0}', space=sflag, size = 0x4, scoped, tag = 'scoped memory for tpu_custom_call.1']
    #allocation7 [shape = 'u8[131072]{0}', space=vmem, size = 0x20000, scoped, tag = 'input window, operand 3, single buffered']
    #allocation8 [shape = 'u8[65536]{0}', space=vmem, size = 0x10000, scoped, tag = 'input window, operand 5, single buffered']
    #allocation9 [shape = 's32[1]{0}', space=sflag, size = 0x4, scoped, tag = 'scoped memory for tpu_custom_call.1']
    #allocation10 [shape = 'u8[8192]{0}', space=vmem, size = 0x2000, scoped, tag = 'output window, operand 0, single buffered']
    %12 = vsyncpa [#allocation3], 0
    %13 = vsyncpa [#allocation6], 0
    %14 = vsyncpa [#allocation9], 0
    %15 = vsyncpa [#allocation4], 0
    // Predicated region
    $region2: #{tpu_custom_call.1} parent=1 // pred_check
      _
    $region3: #{tpu_custom_call.1} parent=1 // pred_check_branch
      %17 = sbr.rel (0) target = $region5
    $region4: #{tpu_custom_call.1} parent=1 // pred_region
      %19 = vsyncadd [#allocation3], 0
      %s20 = sshll.u32 %s0, 4
      %s21 = int_to_ptr.hbm [resolvable:$true] %s20
      %s22 = sshll.u32 [#allocation2], 4
      %s23 = int_to_ptr.vmem [resolvable:$true] %s22
      %28 = dma.hbm_to_vmem [thread:$0]  %s21, 256, %s23, [#allocation3], 128, 128, 8
    $region5: #{tpu_custom_call.1} parent=1 // pred_fallthru
      _
    // Predicated region
    $region6: #{tpu_custom_call.1} parent=1 // pred_check
      _
    $region7: #{tpu_custom_call.1} parent=1 // pred_check_branch
      %30 = sbr.rel (0) target = $region9
    $region8: #{tpu_custom_call.1} parent=1 // pred_region
      %32 = vsyncadd [#allocation6], 0
      %s33 = sshll.u32 %s1, 4
      %s34 = int_to_ptr.hbm [resolvable:$true] %s33
      %s35 = sshll.u32 [#allocation5], 4
      %s36 = int_to_ptr.vmem [resolvable:$true] %s35
      %41 = dma.hbm_to_vmem [thread:$0]  %s34, 2048, %s36, [#allocation6], 128, 128, 8
    $region9: #{tpu_custom_call.1} parent=1 // pred_fallthru
      _
    // Predicated region
    $region10: #{tpu_custom_call.1} parent=1 // pred_check
      _
    $region11: #{tpu_custom_call.1} parent=1 // pred_check_branch
      %43 = sbr.rel (0) target = $region13
    $region12: #{tpu_custom_call.1} parent=1 // pred_region
      _
    $region13: #{tpu_custom_call.1} parent=1 // pred_fallthru
      _
    // Predicated region
    $region14: #{tpu_custom_call.1} parent=1 // pred_check
      _
    $region15: #{tpu_custom_call.1} parent=1 // pred_check_branch
      %45 = sbr.rel (0) target = $region17
    $region16: #{tpu_custom_call.1} parent=1 // pred_region
      %47 = vsyncadd [#allocation6], 0
      %s48 = sshll.u32 %s3, 4
      %s49 = int_to_ptr.hbm [resolvable:$true] %s48
      %s50 = sshll.u32 [#allocation7], 4
      %s51 = int_to_ptr.vmem [resolvable:$true] %s50
      %56 = dma.hbm_to_vmem [thread:$0]  %s49, 4096, %s51, [#allocation6], 128, 128, 8
    $region17: #{tpu_custom_call.1} parent=1 // pred_fallthru
      _
    // Predicated region
    $region18: #{tpu_custom_call.1} parent=1 // pred_check
      _
    $region19: #{tpu_custom_call.1} parent=1 // pred_check_branch
      %58 = sbr.rel (0) target = $region21
    $region20: #{tpu_custom_call.1} parent=1 // pred_region
      _
    $region21: #{tpu_custom_call.1} parent=1 // pred_fallthru
      _
    // Predicated region
    $region22: #{tpu_custom_call.1} parent=1 // pred_check
      _
    $region23: #{tpu_custom_call.1} parent=1 // pred_check_branch
      %60 = sbr.rel (0) target = $region25
    $region24: #{tpu_custom_call.1} parent=1 // pred_region
      %62 = vsyncadd [#allocation9], 0
      %s63 = sshll.u32 %s5, 4
      %s64 = int_to_ptr.hbm [resolvable:$true] %s63
      %s65 = sshll.u32 [#allocation8], 4
      %s66 = int_to_ptr.vmem [resolvable:$true] %s65
      %71 = dma.hbm_to_vmem [thread:$0]  %s64, 2048, %s66, [#allocation9], 128, 128, 8
    $region25: #{tpu_custom_call.1} parent=1 // pred_fallthru
      _
    // Predicated region
    $region26: #{tpu_custom_call.1} parent=1 // pred_check
      _
    $region27: #{tpu_custom_call.1} parent=1 // pred_check_branch
      %73 = sbr.rel (0) target = $region29
    $region28: #{tpu_custom_call.1} parent=1 // pred_region
      _
    $region29: #{tpu_custom_call.1} parent=1 // pred_fallthru
      _
    // Predicated region
    $region30: #{tpu_custom_call.1} parent=1 // pred_check
      _
    $region31: #{tpu_custom_call.1} parent=1 // pred_check_branch
      %75 = sbr.rel (0) target = $region33
    $region32: #{tpu_custom_call.1} parent=1 // pred_region
      %77 = dma.done [#allocation3], 256
    $region33: #{tpu_custom_call.1} parent=1 // pred_fallthru
      _
    // Predicated region
    $region34: #{tpu_custom_call.1} parent=1 // pred_check
      _
    $region35: #{tpu_custom_call.1} parent=1 // pred_check_branch
      %79 = sbr.rel (0) target = $region37
    $region36: #{tpu_custom_call.1} parent=1 // pred_region
      %81 = dma.done [#allocation6], 2048
    $region37: #{tpu_custom_call.1} parent=1 // pred_fallthru
      _
    // Predicated region
    $region38: #{tpu_custom_call.1} parent=1 // pred_check
      _
    $region39: #{tpu_custom_call.1} parent=1 // pred_check_branch
      %83 = sbr.rel (0) target = $region41
    $region40: #{tpu_custom_call.1} parent=1 // pred_region
      %85 = dma.done [#allocation6], 4096
    $region41: #{tpu_custom_call.1} parent=1 // pred_fallthru
      _
    // Predicated region
    $region42: #{tpu_custom_call.1} parent=1 // pred_check
      _
    $region43: #{tpu_custom_call.1} parent=1 // pred_check_branch
      %87 = sbr.rel (0) target = $region45
    $region44: #{tpu_custom_call.1} parent=1 // pred_region
      %89 = dma.done [#allocation9], 2048
    $region45: #{tpu_custom_call.1} parent=1 // pred_fallthru
      _
    %v90 = vld [vmem:[#allocation2] sm:$0xff]
    %v91 = vld [vmem:[#allocation2 + $0x8] sm:$0xff]
    %v92 = vld [vmem:[#allocation5] sm:$0xff]
    %v93 = vld [vmem:[#allocation5 + $0x8] sm:$0xff]
    %v94 = vld [vmem:[#allocation5 + $0x10] sm:$0xff]
    %v95 = vld [vmem:[#allocation5 + $0x18] sm:$0xff]
    %v96 = vld [vmem:[#allocation5 + $0x20] sm:$0xff]
    %v97 = vld [vmem:[#allocation5 + $0x28] sm:$0xff]
    %v98 = vld [vmem:[#allocation5 + $0x30] sm:$0xff]
    %v99 = vld [vmem:[#allocation5 + $0x38] sm:$0xff]
    %v100 = vld [vmem:[#allocation5 + $0x40] sm:$0xff]
    %v101 = vld [vmem:[#allocation5 + $0x48] sm:$0xff]
    %v102 = vld [vmem:[#allocation5 + $0x50] sm:$0xff]
    %v103 = vld [vmem:[#allocation5 + $0x58] sm:$0xff]
    %v104 = vld [vmem:[#allocation5 + $0x60] sm:$0xff]
    %v105 = vld [vmem:[#allocation5 + $0x68] sm:$0xff]
    %v106 = vld [vmem:[#allocation5 + $0x70] sm:$0xff]
    %v107 = vld [vmem:[#allocation5 + $0x78] sm:$0xff]
    %v108 = vld [vmem:[%s2] sm:$0x1]
    %v110 = vperm.slane %v108, 0
    %112 = vmatpush.msra.mxu0 %v107
    %113 = vmatpush.msra.mxu0 %v106
    %114 = vmatpush.msra.mxu0 %v105
    %115 = vmatpush.msra.mxu0 %v104
    %116 = vmatpush.msra.mxu0 %v103
    %117 = vmatpush.msra.mxu0 %v102
    %118 = vmatpush.msra.mxu0 %v101
    %119 = vmatpush.msra.mxu0 %v100
    %120 = vmatpush.msra.mxu0 %v99
    %121 = vmatpush.msra.mxu0 %v98
    %122 = vmatpush.msra.mxu0 %v97
    %123 = vmatpush.msra.mxu0 %v96
    %124 = vmatpush.msra.mxu0 %v95
    %125 = vmatpush.msra.mxu0 %v94
    %126 = vmatpush.msra.mxu0 %v93
    %127 = vmatpush.msra.mxu0 %v92
    %128 = vmatmul.f32.gmra.mxu0 %v90
    %v129 = vpop.f32.mrf.mxu0
    %v130 = vadd.f32 %v110, %v129
    %131 = vmatmul.f32.gmra.mxu0 %v91
    %v132 = vpop.f32.mrf.mxu0
    %v133 = vadd.f32 %v110, %v132
    %134 = vdwg.mxu0
    %v135 = vmax.f32 %v130, 0.0
    %v136 = vmax.f32 %v133, 0.0
    %v137 = vld [vmem:[#allocation7] sm:$0xff]
    %v138 = vld [vmem:[#allocation7 + $0x8] sm:$0xff]
    %v139 = vld [vmem:[#allocation7 + $0x10] sm:$0xff]
    %v140 = vld [vmem:[#allocation7 + $0x18] sm:$0xff]
    %v141 = vld [vmem:[#allocation7 + $0x20] sm:$0xff]
    %v142 = vld [vmem:[#allocation7 + $0x28] sm:$0xff]
    %v143 = vld [vmem:[#allocation7 + $0x30] sm:$0xff]
    %v144 = vld [vmem:[#allocation7 + $0x38] sm:$0xff]
    %v145 = vld [vmem:[#allocation7 + $0x40] sm:$0xff]
    %v146 = vld [vmem:[#allocation7 + $0x48] sm:$0xff]
    %v147 = vld [vmem:[#allocation7 + $0x50] sm:$0xff]
    %v148 = vld [vmem:[#allocation7 + $0x58] sm:$0xff]
    %v149 = vld [vmem:[#allocation7 + $0x60] sm:$0xff]
    %v150 = vld [vmem:[#allocation7 + $0x68] sm:$0xff]
    %v151 = vld [vmem:[#allocation7 + $0x70] sm:$0xff]
    %v152 = vld [vmem:[#allocation7 + $0x78] sm:$0xff]
    %v153 = vld [vmem:[%s4] sm:$0x1]
    %v155 = vperm.slane %v153, 0
    %157 = vmatpush.msra.mxu0 %v152
    %158 = vmatpush.msra.mxu0 %v151
    %159 = vmatpush.msra.mxu0 %v150
    %160 = vmatpush.msra.mxu0 %v149
    %161 = vmatpush.msra.mxu0 %v148
    %162 = vmatpush.msra.mxu0 %v147
    %163 = vmatpush.msra.mxu0 %v146
    %164 = vmatpush.msra.mxu0 %v145
    %165 = vmatpush.msra.mxu0 %v144
    %166 = vmatpush.msra.mxu0 %v143
    %167 = vmatpush.msra.mxu0 %v142
    %168 = vmatpush.msra.mxu0 %v141
    %169 = vmatpush.msra.mxu0 %v140
    %170 = vmatpush.msra.mxu0 %v139
    %171 = vmatpush.msra.mxu0 %v138
    %172 = vmatpush.msra.mxu0 %v137
    %173 = vmatmul.f32.gmra.mxu0 %v135
    %v174 = vpop.f32.mrf.mxu0
    %v175 = vadd.f32 %v155, %v174
    %176 = vmatmul.f32.gmra.mxu0 %v136
    %v177 = vpop.f32.mrf.mxu0
    %v178 = vadd.f32 %v155, %v177
    %179 = vdwg.mxu0
    %v180 = vmax.f32 %v175, 0.0
    %v181 = vmax.f32 %v178, 0.0
    %s182 = scalar_lea.vmem [#allocation7], 128
    %v183 = vld [vmem:[%s182] sm:$0xff]
    %v184 = vld [vmem:[%s182 + $0x8] sm:$0xff]
    %v185 = vld [vmem:[%s182 + $0x10] sm:$0xff]
    %v186 = vld [vmem:[%s182 + $0x18] sm:$0xff]
    %v187 = vld [vmem:[%s182 + $0x20] sm:$0xff]
    %v188 = vld [vmem:[%s182 + $0x28] sm:$0xff]
    %v189 = vld [vmem:[%s182 + $0x30] sm:$0xff]
    %v190 = vld [vmem:[%s182 + $0x38] sm:$0xff]
    %v191 = vld [vmem:[%s182 + $0x40] sm:$0xff]
    %v192 = vld [vmem:[%s182 + $0x48] sm:$0xff]
    %v193 = vld [vmem:[%s182 + $0x50] sm:$0xff]
    %v194 = vld [vmem:[%s182 + $0x58] sm:$0xff]
    %v195 = vld [vmem:[%s182 + $0x60] sm:$0xff]
    %v196 = vld [vmem:[%s182 + $0x68] sm:$0xff]
    %v197 = vld [vmem:[%s182 + $0x70] sm:$0xff]
    %v198 = vld [vmem:[%s182 + $0x78] sm:$0xff]
    %s199 = scalar_lea.vmem %s4, 1
    %v200 = vld [vmem:[%s199] sm:$0x1]
    %v202 = vperm.slane %v200, 0
    %204 = vmatpush.msra.mxu0 %v198
    %205 = vmatpush.msra.mxu0 %v197
    %206 = vmatpush.msra.mxu0 %v196
    %207 = vmatpush.msra.mxu0 %v195
    %208 = vmatpush.msra.mxu0 %v194
    %209 = vmatpush.msra.mxu0 %v193
    %210 = vmatpush.msra.mxu0 %v192
    %211 = vmatpush.msra.mxu0 %v191
    %212 = vmatpush.msra.mxu0 %v190
    %213 = vmatpush.msra.mxu0 %v189
    %214 = vmatpush.msra.mxu0 %v188
    %215 = vmatpush.msra.mxu0 %v187
    %216 = vmatpush.msra.mxu0 %v186
    %217 = vmatpush.msra.mxu0 %v185
    %218 = vmatpush.msra.mxu0 %v184
    %219 = vmatpush.msra.mxu0 %v183
    %220 = vmatmul.f32.gmra.mxu0 %v180
    %v221 = vpop.f32.mrf.mxu0
    %v222 = vadd.f32 %v202, %v221
    %223 = vmatmul.f32.gmra.mxu0 %v181
    %v224 = vpop.f32.mrf.mxu0
    %v225 = vadd.f32 %v202, %v224
    %226 = vdwg.mxu0
    %v227 = vmax.f32 %v222, 0.0
    %v228 = vmax.f32 %v225, 0.0
    %v229 = vld [vmem:[#allocation8] sm:$0xff]
    %v230 = vld [vmem:[#allocation8 + $0x8] sm:$0xff]
    %v231 = vld [vmem:[#allocation8 + $0x10] sm:$0xff]
    %v232 = vld [vmem:[#allocation8 + $0x18] sm:$0xff]
    %v233 = vld [vmem:[#allocation8 + $0x20] sm:$0xff]
    %v234 = vld [vmem:[#allocation8 + $0x28] sm:$0xff]
    %v235 = vld [vmem:[#allocation8 + $0x30] sm:$0xff]
    %v236 = vld [vmem:[#allocation8 + $0x38] sm:$0xff]
    %v237 = vld [vmem:[#allocation8 + $0x40] sm:$0xff]
    %v238 = vld [vmem:[#allocation8 + $0x48] sm:$0xff]
    %v239 = vld [vmem:[#allocation8 + $0x50] sm:$0xff]
    %v240 = vld [vmem:[#allocation8 + $0x58] sm:$0xff]
    %v241 = vld [vmem:[#allocation8 + $0x60] sm:$0xff]
    %v242 = vld [vmem:[#allocation8 + $0x68] sm:$0xff]
    %v243 = vld [vmem:[#allocation8 + $0x70] sm:$0xff]
    %v244 = vld [vmem:[#allocation8 + $0x78] sm:$0xff]
    %v245 = vld [vmem:[%s6] sm:$0x1]
    %v247 = vperm.slane %v245, 0
    %249 = vmatpush.msra.mxu0 %v244
    %250 = vmatpush.msra.mxu0 %v243
    %251 = vmatpush.msra.mxu0 %v242
    %252 = vmatpush.msra.mxu0 %v241
    %253 = vmatpush.msra.mxu0 %v240
    %254 = vmatpush.msra.mxu0 %v239
    %255 = vmatpush.msra.mxu0 %v238
    %256 = vmatpush.msra.mxu0 %v237
    %257 = vmatpush.msra.mxu0 %v236
    %258 = vmatpush.msra.mxu0 %v235
    %259 = vmatpush.msra.mxu0 %v234
    %260 = vmatpush.msra.mxu0 %v233
    %261 = vmatpush.msra.mxu0 %v232
    %262 = vmatpush.msra.mxu0 %v231
    %263 = vmatpush.msra.mxu0 %v230
    %264 = vmatpush.msra.mxu0 %v229
    %265 = vmatmul.f32.gmra.mxu0 %v227
    %v266 = vpop.f32.mrf.mxu0
    %v267 = vadd.f32 %v247, %v266
    %268 = vmatmul.f32.gmra.mxu0 %v228
    %v269 = vpop.f32.mrf.mxu0
    %v270 = vadd.f32 %v247, %v269
    %271 = vdwg.mxu0
    %272 = vst [vmem:[#allocation10] sm:$0xff] %v267
    %273 = vst [vmem:[#allocation10 + $0x8] sm:$0xff] %v270
    // Predicated region
    $region46: #{tpu_custom_call.1} parent=1 // pred_check
      _
    $region47: #{tpu_custom_call.1} parent=1 // pred_check_branch
      %275 = sbr.rel (0) target = $region49
    $region48: #{tpu_custom_call.1} parent=1 // pred_region
      %277 = vsyncadd [#allocation4], 0
      %s278 = sshll.u32 [#allocation10], 4
      %s279 = int_to_ptr.vmem [resolvable:$true] %s278
      %s280 = sshll.u32 %s7, 4
      %s281 = int_to_ptr.hbm [resolvable:$true] %s280
      %286 = dma.vmem_to_hbm [thread:$0]  %s279, 256, %s281, [#allocation4], 128, 128, 8
    $region49: #{tpu_custom_call.1} parent=1 // pred_fallthru
      _
    // Predicated region
    $region50: #{tpu_custom_call.1} parent=1 // pred_check
      _
    $region51: #{tpu_custom_call.1} parent=1 // pred_check_branch
      %288 = sbr.rel (0) target = $region53
    $region52: #{tpu_custom_call.1} parent=1 // pred_region
      %290 = dma.done [#allocation4], 256
    $region53: #{tpu_custom_call.1} parent=1 // pred_fallthru
      _
    %291 = vsyncpa [#allocation3], 1
    %292 = vsyncpa [#allocation6], 1
    %293 = vsyncpa [#allocation9], 1
    %294 = vsyncpa [#allocation4], 1

</llo_original>
